<compile_context>
chip_gen: v7x
topology: tpu7x:2x2x1
jax: 0.10.0
libtpu: 0.0.40
codegen_flags: <defaults>
</compile_context>

<pallas_src>
import functools
import numpy as np

import jax
import jax.numpy as jnp
from jax.experimental import pallas as pl
from jax.experimental.pallas import tpu as pltpu


# ----------------------------------------------------------------------------
# small host helpers
# ----------------------------------------------------------------------------
def _round_up(n: int, m: int) -> int:
    return ((n + m - 1) // m) * m


def _cdiv(a: int, b: int) -> int:
    return -(-a // b)


def _adaptive_avgpool_matrix(c_in: int, l_out: int) -> np.ndarray:
    """(c_in, l_out) matrix reproducing torch adaptive_avg_pool1d bin edges."""
    m = np.zeros((c_in, l_out), np.float32)
    for j in range(l_out):
        start = (j * c_in) // l_out
        end = -(((-(j + 1)) * c_in) // l_out)  # ceil((j+1)*c_in/l_out)
        m[start:end, j] = 1.0 / (end - start)
    return m


def _linear_resize_matrix(n_in: int, n_out: int) -> np.ndarray:
    """(n_in, n_out) matrix for 1-D linear resize (align_corners=False)."""
    m = np.zeros((n_in, n_out), np.float32)
    for t in range(n_out):
        if n_in == 1:
            m[0, t] = 1.0
            continue
        src = (t + 0.5) * n_in / n_out - 0.5
        src = min(max(src, 0.0), float(n_in - 1))
        i0 = int(np.floor(src))
        i1 = min(i0 + 1, n_in - 1)
        w = src - i0
        m[i0, t] += 1.0 - w
        m[i1, t] += w
    return m


# ----------------------------------------------------------------------------
# host-side parameter build: fuse all 5 scales into 3 lane-dense weight slabs
# ----------------------------------------------------------------------------
def make_params(C: int, seed: int = 0, num_scales: int = 5,
                fold_l2_max_width: int = 2048):
    """Deterministic synthetic AutoFeature parameters, pre-fused for the kernel.

    Fused slabs (S scales, F2 = 2*C, per-scale slot width WSLOT = 2*F2):
      w1 : (Cp,  TOT1P)        pool @ [W1a | W2a] per scale; layer-1 biases in
                               row C (consumed via the ones-column in `center`)
      w2 : (TOT1P, TOT1P)      block-diag(W1b, W2b) over all scales  [fold_l2]
           (S, WSLOT, WSLOT)   per-scale layer-2 blocks               [else]
      b2 : (1, TOT1P)          layer-2 biases
      w3 : (TOT1P, OUTP)       branch-sum + linear-resize + code column [fold]
           (S, WSLOT, OUTP)    per-scale version                        [else]
      b3 : (1, OUTP)           zeros except code bias at column S*F2
    All lane dims (TOT1P, OUTP, WSLOT when per-scale) are multiples of 128.
    """
    S = num_scales
    F2 = 2 * C
    lengths = [C] + [int(C / k + 0.99) for k in (2, 4, 6, 8)][: S - 1]
    assert len(lengths) == S
    rng = np.random.default_rng(seed)

    def dense(fan_in, shape):
        return (rng.standard_normal(shape) / np.sqrt(fan_in)).astype(np.float32)

    Cp = _round_up(C + 1, 16)            # +1 column hosts the layer-1 bias row
    fold_l2 = (S * 2 * F2) <= fold_l2_max_width
    WSLOT = 2 * F2 if fold_l2 else _round_up(2 * F2, 128)
    TOT1P = _round_up(S * WSLOT, 128) if fold_l2 else S * WSLOT
    code_col = S * F2
    OUTP = _round_up(S * F2 + 1, 128)    # features + code column, lane-dense

    w1 = np.zeros((Cp, TOT1P), np.float32)
    b2 = np.zeros((1, TOT1P), np.float32)
    b3 = np.zeros((1, OUTP), np.float32)
    if fold_l2:
        w2 = np.zeros((TOT1P, TOT1P), np.float32)
        w3 = np.zeros((TOT1P, OUTP), np.float32)
    else:
        w2 = np.zeros((S, WSLOT, WSLOT), np.float32)
        w3 = np.zeros((S, WSLOT, OUTP), np.float32)

    # TODO(synk): resnet50(1) backbone not reproduced; linear code head stand-in.
    wc = dense(S * F2, (S * F2, 1))
    bc = dense(1, (1,))[0]

    raw_scales = []
    for s, L in enumerate(lengths):
        pool = _adaptive_avgpool_matrix(C, L)      # (C, L)
        rsz = _linear_resize_matrix(2 * L, F2)     # (2L, F2)
        w1a = dense(L, (L, 2 * L)); b1a = dense(L, (2 * L,))
        w1b = dense(2 * L, (2 * L, 2 * L)); b1b = dense(2 * L, (2 * L,))
        w2a = dense(L, (L, 2 * L)); b2a = dense(L, (2 * L,))
        w2b = dense(2 * L, (2 * L, 2 * L)); b2b = dense(2 * L, (2 * L,))
        raw_scales.append(dict(L=L, pool=pool, rsz=rsz, w1a=w1a, b1a=b1a,
                               w1b=w1b, b1b=b1b, w2a=w2a, b2a=b2a,
                               w2b=w2b, b2b=b2b))

        off = s * WSLOT
        # ---- layer 1: pool folded in, both branches side by side ----
        w1[:C, off:off + 2 * L] = pool @ w1a
        w1[:C, off + F2:off + F2 + 2 * L] = pool @ w2a
        w1[C, off:off + 2 * L] = b1a                     # bias row (ones column)
        w1[C, off + F2:off + F2 + 2 * L] = b2a
        # ---- layer 2: block-diagonal over scales & branches ----
        if fold_l2:
            w2[off:off + 2 * L, off:off + 2 * L] = w1b
            w2[off + F2:off + F2 + 2 * L, off + F2:off + F2 + 2 * L] = w2b
        else:
            w2[s, :2 * L, :2 * L] = w1b
            w2[s, F2:F2 + 2 * L, F2:F2 + 2 * L] = w2b
        b2[0, off:off + 2 * L] = b1b
        b2[0, off + F2:off + F2 + 2 * L] = b2b
        # ---- layer 3: branch sum + linear resize + code column ----
        col = s * F2
        vc = rsz @ wc[col:col + F2, 0]                   # (2L,)
        if fold_l2:
            w3[off:off + 2 * L, col:col + F2] = rsz
            w3[off + F2:off + F2 + 2 * L, col:col + F2] = rsz
            w3[off:off + 2 * L, code_col] = vc
            w3[off + F2:off + F2 + 2 * L, code_col] = vc
        else:
            w3[s, :2 * L, col:col + F2] = rsz
            w3[s, F2:F2 + 2 * L, col:col + F2] = rsz
            w3[s, :2 * L, code_col] = vc
            w3[s, F2:F2 + 2 * L, code_col] = vc
    b3[0, code_col] = bc

    params = dict(
        w1=jnp.asarray(w1, jnp.bfloat16),
        w2=jnp.asarray(w2, jnp.bfloat16),
        b2=jnp.asarray(b2, jnp.float32),
        w3=jnp.asarray(w3, jnp.bfloat16),
        b3=jnp.asarray(b3, jnp.float32),
    )
    meta = dict(S=S, C=C, Cp=Cp, F2=F2, WSLOT=WSLOT, TOT1P=TOT1P, OUTP=OUTP,
                code_col=code_col, fold_l2=fold_l2)
    raw = dict(scales=raw_scales, wc=wc, bc=bc)
    return params, meta, raw


# ----------------------------------------------------------------------------
# Pallas kernel: 3 lane-dense matmuls per batch tile (all scales folded)
# ----------------------------------------------------------------------------
def autofeature_kernel(center_ref, w1_ref, w2_ref, b2_ref, w3_ref, b3_ref,
                       out_ref, *, fold_l2, num_scales, wslot):
    f32 = jnp.float32
    bf16 = jnp.bfloat16

    x = center_ref[...]                                           # (Bt, Cp) bf16
    # layer 1 (all scales, both branches; pool + bias folded into w1)
    h = jax.nn.relu(jnp.dot(x, w1_ref[...], preferred_element_type=f32))
    h = h.astype(bf16)

    if fold_l2:
        # layer 2: one block-diagonal matmul over all scales/branches
        g = jax.nn.relu(jnp.dot(h, w2_ref[...], preferred_element_type=f32)
                        + b2_ref[...])
        # layer 3: branch sum + linear resize + code head, one matmul
        out = jnp.dot(g.astype(bf16), w3_ref[...], preferred_element_type=f32)
    else:
        # large-C path: keep layer 2/3 per scale (128-aligned slots), accumulate
        # directly into the lane-dense output slab (no concatenate).
        out = None
        for s in range(num_scales):                               # static unroll
            hs = h[:, s * wslot:(s + 1) * wslot]
            gs = jax.nn.relu(
                jnp.dot(hs, w2_ref[s], preferred_element_type=f32)
                + b2_ref[:, s * wslot:(s + 1) * wslot])
            c = jnp.dot(gs.astype(bf16), w3_ref[s], preferred_element_type=f32)
            out = c if out is None else out + c

    # single unmasked, lane-dense store: [ MS_Feat | code | zero padding ]
    out_ref[...] = (out + b3_ref[...]).astype(out_ref.dtype)


def auto_feature_forward(x, params, meta, *, b_tile_max: int = 512,
                         min_batch_tiles: int = 1):
    """x: (B, C, H, W) NCHW. Returns (codes (B,1), MS_Feat (B, 5*2C)).

    min_batch_tiles: set to 2 on v7x (2 TensorCores/chip) when B is large so the
    "parallel" grid axis feeds both cores; keep 1 on v5e/v6e (single TC).
    """
    B, C, H, W = x.shape
    S, F2 = meta["S"], meta["F2"]
    Cp, TOT1P, OUTP = meta["Cp"], meta["TOT1P"], meta["OUTP"]
    code_col, WSLOT, fold_l2 = meta["code_col"], meta["WSLOT"], meta["fold_l2"]

    # center_pixel(x) + ones column (carries the layer-1 bias), cast once to bf16
    center = x[:, :, H // 2, W // 2]
    center = jnp.concatenate([center, jnp.ones((B, 1), x.dtype)], axis=1)
    center = jnp.pad(center, ((0, 0), (0, Cp - (C + 1)))).astype(jnp.bfloat16)

    # batch tiling: sublane-aligned, at least `min_batch_tiles` grid steps
    Bt = _round_up(_cdiv(_round_up(B, 8), max(min_batch_tiles, 1)), 8)
    Bt = max(8, min(b_tile_max, Bt))
    Bp = _round_up(B, Bt)
    if Bp != B:
        center = jnp.pad(center, ((0, Bp - B), (0, 0)))
    nb = Bp // Bt

    kernel = functools.partial(autofeature_kernel, fold_l2=fold_l2,
                               num_scales=S, wslot=WSLOT)

    if fold_l2:
        w2_spec = pl.BlockSpec((TOT1P, TOT1P), lambda i: (0, 0))
        w3_spec = pl.BlockSpec((TOT1P, OUTP), lambda i: (0, 0))
    else:
        w2_spec = pl.BlockSpec((S, WSLOT, WSLOT), lambda i: (0, 0, 0))
        w3_spec = pl.BlockSpec((S, WSLOT, OUTP), lambda i: (0, 0, 0))

    in_arrays = (center, params["w1"], params["w2"], params["b2"],
                 params["w3"], params["b3"])

    # explicit VMEM budget (constant slabs + per-tile I/O are double-buffered)
    need = 2 * sum(int(a.size) * a.dtype.itemsize for a in in_arrays[1:])
    need += 2 * (Bt * Cp * 2 + Bt * OUTP * x.dtype.itemsize)
    vmem_limit = int(min(max(2 * need, 8 << 20), 100 << 20))

    out = pl.pallas_call(
        kernel,
        out_shape=jax.ShapeDtypeStruct((Bp, OUTP), x.dtype),
        grid_spec=pltpu.PrefetchScalarGridSpec(
            num_scalar_prefetch=0,
            grid=(nb,),
            in_specs=[
                pl.BlockSpec((Bt, Cp), lambda i: (i, 0)),        # center (+ones)
                pl.BlockSpec((Cp, TOT1P), lambda i: (0, 0)),     # w1 (bias row in)
                w2_spec,                                         # w2
                pl.BlockSpec((1, TOT1P), lambda i: (0, 0)),      # b2
                w3_spec,                                         # w3 (+code col)
                pl.BlockSpec((1, OUTP), lambda i: (0, 0)),       # b3 (code bias)
            ],
            out_specs=pl.BlockSpec((Bt, OUTP), lambda i: (i, 0)),
        ),
        compiler_params=pltpu.CompilerParams(
            dimension_semantics=("parallel",),
            vmem_limit_bytes=vmem_limit),
    )(*in_arrays)

    feat = out[:B, :S * F2]                    # torch.cat([...], 1)
    codes = out[:B, code_col:code_col + 1]     # stand-in code head output
    return codes, feat


# ----------------------------------------------------------------------------
# pure-numpy f32 reference (unfused, per-scale) for correctness validation
# ----------------------------------------------------------------------------
def reference_forward(x_np, raw, meta):
    relu = lambda a: np.maximum(a, 0.0)
    x_np = np.asarray(x_np, np.float32)
    B, C, H, W = x_np.shape
    center = x_np[:, :, H // 2, W // 2]
    feats = []
    for sc in raw["scales"]:
        spec = center @ sc["pool"]
        g1 = relu(relu(spec @ sc["w1a"] + sc["b1a"]) @ sc["w1b"] + sc["b1b"])
        g2 = relu(relu(spec @ sc["w2a"] + sc["b2a"]) @ sc["w2b"] + sc["b2b"])
        feats.append((g1 + g2) @ sc["rsz"])
    ms_feat = np.concatenate(feats, axis=1)
    codes = ms_feat @ raw["wc"] + raw["bc"]
    return codes, ms_feat


if __name__ == "__main__":
    B, C, H, W = 2, 16, 9, 9            # small hyperspectral patch, NCHW
    key = jax.random.PRNGKey(0)
    x = jax.random.normal(key, (B, C, H, W), jnp.float32)
    params, meta, raw = make_params(C, seed=0)

    codes, ms_feat = auto_feature_forward(x, params, meta)
    jax.block_until_ready((codes, ms_feat))

    assert codes.shape == (B, 1)
    assert ms_feat.shape == (B, meta["S"] * meta["F2"])
    assert bool(jnp.all(jnp.isfinite(codes))) and bool(jnp.all(jnp.isfinite(ms_feat)))

    # validate the host-side fusion + bf16 path against an unfused f32 reference
    codes_ref, feat_ref = reference_forward(np.asarray(x), raw, meta)
    scale = max(1.0, float(np.max(np.abs(feat_ref))), float(np.max(np.abs(codes_ref))))
    err = max(float(np.max(np.abs(np.asarray(ms_feat, np.float32) - feat_ref))),
              float(np.max(np.abs(np.asarray(codes, np.float32) - codes_ref))))
    assert err <= 0.05 * scale, f"kernel/reference mismatch: {err} (scale {scale})"

    print("KERNEL_OK")
</pallas_src>

<mosaic_0001>
module attributes {stable_mosaic.version = 11 : i64} {
  func.func @autofeature_kernel(%arg0: i32, %arg1: memref<8x32xbf16, #tpu.memory_space<vmem>>, %arg2: memref<32x384xbf16, #tpu.memory_space<vmem>>, %arg3: memref<384x384xbf16, #tpu.memory_space<vmem>>, %arg4: memref<1x384xf32, #tpu.memory_space<vmem>>, %arg5: memref<384x256xbf16, #tpu.memory_space<vmem>>, %arg6: memref<1x256xf32, #tpu.memory_space<vmem>>, %arg7: memref<8x256xf32, #tpu.memory_space<vmem>>) attributes {dimension_semantics = [#tpu.dimension_semantics<parallel>], iteration_bounds = array<i64: 1>, scalar_prefetch = 0 : i64, scratch_operands = 0 : i64, tpu.core_type = #tpu.core_type<tc>, window_params = [{transform_indices = @transform_0, window_bounds = array<i64: 8, 32>}, {pipeline_mode = #tpu.pipeline_mode<synchronous>, transform_indices = @transform_1, window_bounds = array<i64: 32, 384>}, {pipeline_mode = #tpu.pipeline_mode<synchronous>, transform_indices = @transform_2, window_bounds = array<i64: 384, 384>}, {pipeline_mode = #tpu.pipeline_mode<synchronous>, transform_indices = @transform_3, window_bounds = array<i64: 1, 384>}, {pipeline_mode = #tpu.pipeline_mode<synchronous>, transform_indices = @transform_4, window_bounds = array<i64: 384, 256>}, {pipeline_mode = #tpu.pipeline_mode<synchronous>, transform_indices = @transform_5, window_bounds = array<i64: 1, 256>}, {transform_indices = @transform_6, window_bounds = array<i64: 8, 256>}]} {
    %c0 = arith.constant 0 : index
    %c0_0 = arith.constant 0 : index
    %0 = vector.load %arg1[%c0, %c0_0] : memref<8x32xbf16, #tpu.memory_space<vmem>>, vector<8x32xbf16>
    %c0_1 = arith.constant 0 : index
    %c0_2 = arith.constant 0 : index
    %1 = vector.load %arg2[%c0_1, %c0_2] : memref<32x384xbf16, #tpu.memory_space<vmem>>, vector<32x384xbf16>
    %cst = arith.constant dense<0.000000e+00> : vector<8x384xf32>
    %2 = tpu.matmul %0, %1, %cst {dimension_numbers = #tpu.dot_dimension_numbers<[1], [0], [0], [1], [0, 0, 1, 1], [], []>} : vector<8x32xbf16>, vector<32x384xbf16>, vector<8x384xf32> -> vector<8x384xf32>
    %cst_3 = arith.constant 0.000000e+00 : f32
    %3 = vector.broadcast %cst_3 : f32 to vector<8x384xf32>
    %4 = arith.maximumf %2, %3 : vector<8x384xf32>
    %5 = arith.truncf %4 : vector<8x384xf32> to vector<8x384xbf16>
    %c0_4 = arith.constant 0 : index
    %c0_5 = arith.constant 0 : index
    %6 = vector.load %arg3[%c0_4, %c0_5] : memref<384x384xbf16, #tpu.memory_space<vmem>>, vector<384x384xbf16>
    %cst_6 = arith.constant dense<0.000000e+00> : vector<8x384xf32>
    %7 = tpu.matmul %5, %6, %cst_6 {dimension_numbers = #tpu.dot_dimension_numbers<[1], [0], [0], [1], [0, 0, 1, 1], [], []>} : vector<8x384xbf16>, vector<384x384xbf16>, vector<8x384xf32> -> vector<8x384xf32>
    %c0_7 = arith.constant 0 : index
    %c0_8 = arith.constant 0 : index
    %8 = vector.load %arg4[%c0_7, %c0_8] : memref<1x384xf32, #tpu.memory_space<vmem>>, vector<1x384xf32>
    %9 = vector.broadcast %8 : vector<1x384xf32> to vector<8x384xf32>
    %10 = arith.addf %7, %9 : vector<8x384xf32>
    %cst_9 = arith.constant 0.000000e+00 : f32
    %11 = vector.broadcast %cst_9 : f32 to vector<8x384xf32>
    %12 = arith.maximumf %10, %11 : vector<8x384xf32>
    %13 = arith.truncf %12 : vector<8x384xf32> to vector<8x384xbf16>
    %c0_10 = arith.constant 0 : index
    %c0_11 = arith.constant 0 : index
    %14 = vector.load %arg5[%c0_10, %c0_11] : memref<384x256xbf16, #tpu.memory_space<vmem>>, vector<384x256xbf16>
    %cst_12 = arith.constant dense<0.000000e+00> : vector<8x256xf32>
    %15 = tpu.matmul %13, %14, %cst_12 {dimension_numbers = #tpu.dot_dimension_numbers<[1], [0], [0], [1], [0, 0, 1, 1], [], []>} : vector<8x384xbf16>, vector<384x256xbf16>, vector<8x256xf32> -> vector<8x256xf32>
    %c0_13 = arith.constant 0 : index
    %c0_14 = arith.constant 0 : index
    %16 = vector.load %arg6[%c0_13, %c0_14] : memref<1x256xf32, #tpu.memory_space<vmem>>, vector<1x256xf32>
    %17 = vector.broadcast %16 : vector<1x256xf32> to vector<8x256xf32>
    %18 = arith.addf %15, %17 : vector<8x256xf32>
    %c0_15 = arith.constant 0 : index
    %c0_16 = arith.constant 0 : index
    %19 = vector.load %arg7[%c0_15, %c0_16] : memref<8x256xf32, #tpu.memory_space<vmem>>, vector<8x256xf32>
    tpu.vector_store %arg7[%c0_15, %c0_16], %18 {strides = array<i32>} : memref<8x256xf32, #tpu.memory_space<vmem>>, vector<8x256xf32>,
    return
  }
  func.func @transform_0(%arg0: i32) -> (i32, i32) {
    %c0_i32 = arith.constant 0 : i32
    %c0_i32_0 = arith.constant 0 : i32
    return %arg0, %c0_i32 : i32, i32
  }
  func.func @transform_1(%arg0: i32) -> (i32, i32) {
    %c0_i32 = arith.constant 0 : i32
    %c0_i32_0 = arith.constant 0 : i32
    %c0_i32_1 = arith.constant 0 : i32
    return %c0_i32, %c0_i32_0 : i32, i32
  }
  func.func @transform_2(%arg0: i32) -> (i32, i32) {
    %c0_i32 = arith.constant 0 : i32
    %c0_i32_0 = arith.constant 0 : i32
    %c0_i32_1 = arith.constant 0 : i32
    return %c0_i32, %c0_i32_0 : i32, i32
  }
  func.func @transform_3(%arg0: i32) -> (i32, i32) {
    %c0_i32 = arith.constant 0 : i32
    %c0_i32_0 = arith.constant 0 : i32
    %c0_i32_1 = arith.constant 0 : i32
    return %c0_i32, %c0_i32_0 : i32, i32
  }
  func.func @transform_4(%arg0: i32) -> (i32, i32) {
    %c0_i32 = arith.constant 0 : i32
    %c0_i32_0 = arith.constant 0 : i32
    %c0_i32_1 = arith.constant 0 : i32
    return %c0_i32, %c0_i32_0 : i32, i32
  }
  func.func @transform_5(%arg0: i32) -> (i32, i32) {
    %c0_i32 = arith.constant 0 : i32
    %c0_i32_0 = arith.constant 0 : i32
    %c0_i32_1 = arith.constant 0 : i32
    return %c0_i32, %c0_i32_0 : i32, i32
  }
  func.func @transform_6(%arg0: i32) -> (i32, i32) {
    %c0_i32 = arith.constant 0 : i32
    %c0_i32_0 = arith.constant 0 : i32
    return %arg0, %c0_i32 : i32, i32
  }
}

</mosaic_0001>

<llo_original>
// kernel: tpu_custom_call.1
$region0: #{tpu_custom_call.1}
  #allocation0 [shape = 'u32[]', space=smem, size = 0x4, offset = 0x4, fixed_abs, tag = 'smem constant byte address 0x4 - core index']
  #allocation1 [shape = 'u32[144,128]{1,0:T(1,128)}', space=vmem, size = 0x12000, scoped, tag = 'internal scratch']
  %s0 = inlined_call_operand.hbm [shape: bf16[8,32], index: 0, kind: input, shape index: {}]
  %s1 = inlined_call_operand.hbm [shape: bf16[32,384], index: 1, kind: input, shape index: {}]
  %s2 = inlined_call_operand.hbm [shape: bf16[384,384], index: 2, kind: input, shape index: {}]
  %s3 = inlined_call_operand.vmem [shape: f32[1,384], index: 3, kind: input, shape index: {}]
  %s4 = inlined_call_operand.hbm [shape: bf16[384,256], index: 4, kind: input, shape index: {}]
  %s5 = inlined_call_operand.vmem [shape: f32[1,256], index: 5, kind: input, shape index: {}]
  %s6 = inlined_call_operand.hbm [shape: f32[8,256], index: 6, kind: output, shape index: {}]
  %s7 = sld [smem:[#allocation0]]
  $region50: #{tpu_custom_call.1} parent=0
    _
  %s9 = ssub.s32 1, %s7
  %s10 = scalar_select 0, %s9, %s7
  $region1: #{tpu_custom_call.1} parent=0
    #allocation2 [shape = 'u8[2048]{0}', space=vmem, size = 0x800, scoped, tag = 'input window, operand 0, single buffered']
    #allocation3 [shape = 's32[1]{0}', space=sflag, size = 0x4, scoped, tag = 'scoped memory for tpu_custom_call.1']
    #allocation4 [shape = 's32[1]{0}', space=sflag, size = 0x4, scoped, tag = 'scoped memory for tpu_custom_call.1']
    #allocation5 [shape = 'u8[24576]{0}', space=vmem, size = 0x6000, scoped, tag = 'input window, operand 1, single buffered']
    #allocation6 [shape = 's32[1]{0}', space=sflag, size = 0x4, scoped, tag = 'scoped memory for tpu_custom_call.1']
    #allocation7 [shape = 'u8[294912]{0}', space=vmem, size = 0x48000, scoped, tag = 'input window, operand 2, single buffered']
    #allocation8 [shape = 'u8[196608]{0}', space=vmem, size = 0x30000, scoped, tag = 'input window, operand 4, single buffered']
    #allocation9 [shape = 's32[1]{0}', space=sflag, size = 0x4, scoped, tag = 'scoped memory for tpu_custom_call.1']
    #allocation10 [shape = 'u8[8192]{0}', space=vmem, size = 0x2000, scoped, tag = 'output window, operand 0, single buffered']
    %11 = vsyncpa [#allocation3], 0
    %12 = vsyncpa [#allocation6], 0
    %13 = vsyncpa [#allocation9], 0
    %14 = vsyncpa [#allocation4], 0
    // Predicated region
    $region2: #{tpu_custom_call.1} parent=1 // pred_check
      _
    $region3: #{tpu_custom_call.1} parent=1 // pred_check_branch
      %16 = sbr.rel (0) target = $region5
    $region4: #{tpu_custom_call.1} parent=1 // pred_region
      %s18 = ssub.s32 64, 64
      %19 = vsyncadd [#allocation3], %s18
      %s21 = sshll.u32 [#allocation2], 4
      %s22 = int_to_ptr.vmem [resolvable:$true] %s21
      %24 = dma.hbm_to_vmem [thread:$0]  %s0, 64, %s22, [#allocation3]
    $region5: #{tpu_custom_call.1} parent=1 // pred_fallthru
      _
    // Predicated region
    $region6: #{tpu_custom_call.1} parent=1 // pred_check
      _
    $region7: #{tpu_custom_call.1} parent=1 // pred_check_branch
      %26 = sbr.rel (0) target = $region9
    $region8: #{tpu_custom_call.1} parent=1 // pred_region
      %s28 = ssub.s32 768, 768
      %29 = vsyncadd [#allocation6], %s28
      %s30 = sshll.u32 [#allocation5], 4
      %s31 = int_to_ptr.vmem [resolvable:$true] %s30
      %36 = dma.hbm_to_vmem [thread:$0]  %s1, 768, %s31, [#allocation6], 192, 192, 12
    $region9: #{tpu_custom_call.1} parent=1 // pred_fallthru
      _
    // Predicated region
    $region10: #{tpu_custom_call.1} parent=1 // pred_check
      _
    $region11: #{tpu_custom_call.1} parent=1 // pred_check_branch
      %38 = sbr.rel (0) target = $region13
    $region12: #{tpu_custom_call.1} parent=1 // pred_region
      %s40 = ssub.s32 9216, 9216
      %41 = vsyncadd [#allocation6], %s40
      %s42 = sshll.u32 [#allocation7], 4
      %s43 = int_to_ptr.vmem [resolvable:$true] %s42
      %48 = dma.hbm_to_vmem [thread:$0]  %s2, 9216, %s43, [#allocation6], 192, 192, 12
    $region13: #{tpu_custom_call.1} parent=1 // pred_fallthru
      _
    // Predicated region
    $region14: #{tpu_custom_call.1} parent=1 // pred_check
      _
    $region15: #{tpu_custom_call.1} parent=1 // pred_check_branch
      %50 = sbr.rel (0) target = $region17
    $region16: #{tpu_custom_call.1} parent=1 // pred_region
      _
    $region17: #{tpu_custom_call.1} parent=1 // pred_fallthru
      _
    // Predicated region
    $region18: #{tpu_custom_call.1} parent=1 // pred_check
      _
    $region19: #{tpu_custom_call.1} parent=1 // pred_check_branch
      %52 = sbr.rel (0) target = $region21
    $region20: #{tpu_custom_call.1} parent=1 // pred_region
      %s54 = ssub.s32 6144, 6144
      %55 = vsyncadd [#allocation9], %s54
      %s56 = sshll.u32 [#allocation8], 4
      %s57 = int_to_ptr.vmem [resolvable:$true] %s56
      %62 = dma.hbm_to_vmem [thread:$0]  %s4, 6144, %s57, [#allocation9], 128, 128, 8
    $region21: #{tpu_custom_call.1} parent=1 // pred_fallthru
      _
    // Predicated region
    $region22: #{tpu_custom_call.1} parent=1 // pred_check
      _
    $region23: #{tpu_custom_call.1} parent=1 // pred_check_branch
      %64 = sbr.rel (0) target = $region25
    $region24: #{tpu_custom_call.1} parent=1 // pred_region
      _
    $region25: #{tpu_custom_call.1} parent=1 // pred_fallthru
      _
    // Predicated region
    $region26: #{tpu_custom_call.1} parent=1 // pred_check
      _
    $region27: #{tpu_custom_call.1} parent=1 // pred_check_branch
      %66 = sbr.rel (0) target = $region29
    $region28: #{tpu_custom_call.1} parent=1 // pred_region
      %67 = dma.done [#allocation3], 64
    $region29: #{tpu_custom_call.1} parent=1 // pred_fallthru
      _
    // Predicated region
    $region30: #{tpu_custom_call.1} parent=1 // pred_check
      _
    $region31: #{tpu_custom_call.1} parent=1 // pred_check_branch
      %69 = sbr.rel (0) target = $region33
    $region32: #{tpu_custom_call.1} parent=1 // pred_region
      %70 = dma.done [#allocation6], 768
    $region33: #{tpu_custom_call.1} parent=1 // pred_fallthru
      _
    // Predicated region
    $region34: #{tpu_custom_call.1} parent=1 // pred_check
      _
    $region35: #{tpu_custom_call.1} parent=1 // pred_check_branch
      %72 = sbr.rel (0) target = $region37
    $region36: #{tpu_custom_call.1} parent=1 // pred_region
      %73 = dma.done [#allocation6], 9216
    $region37: #{tpu_custom_call.1} parent=1 // pred_fallthru
      _
    // Predicated region
    $region38: #{tpu_custom_call.1} parent=1 // pred_check
      _
    $region39: #{tpu_custom_call.1} parent=1 // pred_check_branch
      %75 = sbr.rel (0) target = $region41
    $region40: #{tpu_custom_call.1} parent=1 // pred_region
      %76 = dma.done [#allocation9], 6144
    $region41: #{tpu_custom_call.1} parent=1 // pred_fallthru
      _
    %v78 = vld [vmem:[#allocation2] sm:$0xf]
    %v79 = vld [vmem:[#allocation5] sm:$0xff]
    %v80 = vld [vmem:[#allocation5 + $0x8] sm:$0xf]
    %v81 = vld [vmem:[#allocation5 + $0xc] sm:$0xff]
    %v82 = vld [vmem:[#allocation5 + $0x14] sm:$0xf]
    %v83 = vld [vmem:[#allocation5 + $0x18] sm:$0xff]
    %v84 = vld [vmem:[#allocation5 + $0x20] sm:$0xf]
    %v85 = vld [vmem:[#allocation5 + $0x24] sm:$0xff]
    %v86 = vld [vmem:[#allocation5 + $0x2c] sm:$0xf]
    %v95 = vunpack.c.l.b16 %v79
    %v96 = vunpack.c.h.b16 %v79
    %v97 = vunpack.c.l.b16 %v80
    %v98 = vunpack.c.l.b16 %v81
    %v99 = vunpack.c.h.b16 %v81
    %v100 = vunpack.c.l.b16 %v82
    %v101 = vunpack.c.l.b16 %v83
    %v102 = vunpack.c.h.b16 %v83
    %v103 = vunpack.c.l.b16 %v84
    %v104 = vunpack.c.l.b16 %v85
    %v105 = vunpack.c.h.b16 %v85
    %v106 = vunpack.c.l.b16 %v86
    %v107 = vpack.c.b16 %v98, %v95
    %v108 = vpack.c.b16 %v99, %v96
    %v109 = vpack.c.b16 %v100, %v97
    %v110 = vpack.c.b16 %v104, %v101
    %v111 = vpack.c.b16 %v105, %v102
    %v112 = vpack.c.b16 %v106, %v103
    %vm119 = vcmask 261120
    %v121 = vsel %vm119, %v78, 0
    %123 = vmatprep.subr.bf16.mxu0 %v108
    %124 = vmatpush1.bf16.msra.mxu0 %v107
    %125 = vmatprep.subr.bf16.mxu0 %v111
    %126 = vmatpush1.bf16.msra.mxu0 %v110
    %127 = vmatprep.subr.bf16.mxu0 0
    %128 = vmatpush1.bf16.msra.mxu0 0
    %129 = vmatprep.subr.bf16.mxu0 0
    %130 = vmatpush1.bf16.msra.mxu0 0
    %131 = vmatprep.subr.bf16.mxu0 0
    %132 = vmatpush1.bf16.msra.mxu0 0
    %133 = vmatprep.subr.bf16.mxu0 0
    %134 = vmatpush1.bf16.msra.mxu0 0
    %135 = vmatprep.subr.bf16.mxu0 0
    %136 = vmatpush1.bf16.msra.mxu0 0
    %137 = vmatprep.subr.bf16.mxu0 0
    %138 = vmatpush1.bf16.msra.mxu0 0
    %139 = vmatprep.subr.bf16.mxu0 0
    %140 = vmatpush1.bf16.msra.mxu0 0
    %141 = vmatprep.subr.bf16.mxu0 0
    %142 = vmatpush1.bf16.msra.mxu0 0
    %143 = vmatprep.subr.bf16.mxu0 0
    %144 = vmatpush1.bf16.msra.mxu0 0
    %145 = vmatprep.subr.bf16.mxu0 0
    %146 = vmatpush1.bf16.msra.mxu0 0
    %147 = vmatprep.subr.bf16.mxu0 0
    %148 = vmatpush1.bf16.msra.mxu0 0
    %149 = vmatprep.subr.bf16.mxu0 0
    %150 = vmatpush1.bf16.msra.mxu0 0
    %151 = vmatprep.subr.bf16.mxu0 0
    %152 = vmatpush1.bf16.msra.mxu0 0
    %153 = vmatprep.subr.bf16.mxu0 0
    %154 = vmatpush1.bf16.msra.mxu0 0
    %155 = vmatprep.mubr.bf16.mxu0 0
    %156 = vmatmul.mubr.bf16.gmra.mrb[0].mxu0 %v121
    %v157 = vpop.f32.mrb[0].mxu0
    %v158 = vadd.f32 0.0, %v157
    %v159 = vpop.f32.mrb[0].mxu0
    %v160 = vadd.f32 0.0, %v159
    %v161 = vpop.f32.mrb[0].mxu0
    %v162 = vpop.f32.mrb[0].mxu0
    %163 = vdwg.mxu0
    %164 = vmatprep.subr.bf16.mxu0 0
    %165 = vmatpush1.bf16.msra.mxu0 %v109
    %166 = vmatprep.subr.bf16.mxu0 0
    %167 = vmatpush1.bf16.msra.mxu0 %v112
    %168 = vmatprep.subr.bf16.mxu0 0
    %169 = vmatpush1.bf16.msra.mxu0 0
    %170 = vmatprep.subr.bf16.mxu0 0
    %171 = vmatpush1.bf16.msra.mxu0 0
    %172 = vmatprep.subr.bf16.mxu0 0
    %173 = vmatpush1.bf16.msra.mxu0 0
    %174 = vmatprep.subr.bf16.mxu0 0
    %175 = vmatpush1.bf16.msra.mxu0 0
    %176 = vmatprep.subr.bf16.mxu0 0
    %177 = vmatpush1.bf16.msra.mxu0 0
    %178 = vmatprep.subr.bf16.mxu0 0
    %179 = vmatpush1.bf16.msra.mxu0 0
    %180 = vmatprep.subr.bf16.mxu0 0
    %181 = vmatpush1.bf16.msra.mxu0 0
    %182 = vmatprep.subr.bf16.mxu0 0
    %183 = vmatpush1.bf16.msra.mxu0 0
    %184 = vmatprep.subr.bf16.mxu0 0
    %185 = vmatpush1.bf16.msra.mxu0 0
    %186 = vmatprep.subr.bf16.mxu0 0
    %187 = vmatpush1.bf16.msra.mxu0 0
    %188 = vmatprep.subr.bf16.mxu0 0
    %189 = vmatpush1.bf16.msra.mxu0 0
    %190 = vmatprep.subr.bf16.mxu0 0
    %191 = vmatpush1.bf16.msra.mxu0 0
    %192 = vmatprep.subr.bf16.mxu0 0
    %193 = vmatpush1.bf16.msra.mxu0 0
    %194 = vmatprep.subr.bf16.mxu0 0
    %195 = vmatpush1.bf16.msra.mxu0 0
    %196 = vmatprep.mubr.bf16.mxu0 0
    %197 = vmatmul.mubr.bf16.gmra.mrb[0].mxu0 %v121
    %v198 = vpop.f32.mrb[0].mxu0
    %v199 = vadd.f32 0.0, %v198
    %v200 = vpop.f32.mrb[0].mxu0
    %v201 = vpop.f32.mrb[0].mxu0
    %v202 = vpop.f32.mrb[0].mxu0
    %203 = vdwg.mxu0
    %v204 = vmax.f32 %v158, 0.0
    %v205 = vmax.f32 %v160, 0.0
    %v206 = vmax.f32 %v199, 0.0
    %v207 = vpack.c.bf16 %v204, %v204
    %v208 = vpack.c.bf16 %v205, %v205
    %v209 = vpack.c.bf16 %v206, %v206
    %v210 = vld [vmem:[#allocation7] sm:$0xff]
    %v211 = vld [vmem:[#allocation7 + $0x8] sm:$0xf]
    %v212 = vld [vmem:[#allocation7 + $0xc] sm:$0xff]
    %v213 = vld [vmem:[#allocation7 + $0x14] sm:$0xf]
    %v214 = vld [vmem:[#allocation7 + $0x18] sm:$0xff]
    %v215 = vld [vmem:[#allocation7 + $0x20] sm:$0xf]
    %v216 = vld [vmem:[#allocation7 + $0x24] sm:$0xff]
    %v217 = vld [vmem:[#allocation7 + $0x2c] sm:$0xf]
    %v218 = vld [vmem:[#allocation7 + $0x30] sm:$0xff]
    %v219 = vld [vmem:[#allocation7 + $0x38] sm:$0xf]
    %v220 = vld [vmem:[#allocation7 + $0x3c] sm:$0xff]
    %v221 = vld [vmem:[#allocation7 + $0x44] sm:$0xf]
    %v222 = vld [vmem:[#allocation7 + $0x48] sm:$0xff]
    %v223 = vld [vmem:[#allocation7 + $0x50] sm:$0xf]
    %v224 = vld [vmem:[#allocation7 + $0x54] sm:$0xff]
    %v225 = vld [vmem:[#allocation7 + $0x5c] sm:$0xf]
    %v226 = vld [vmem:[#allocation7 + $0x60] sm:$0xff]
    %v227 = vld [vmem:[#allocation7 + $0x68] sm:$0xf]
    %v228 = vld [vmem:[#allocation7 + $0x6c] sm:$0xff]
    %v229 = vld [vmem:[#allocation7 + $0x74] sm:$0xf]
    %v230 = vld [vmem:[#allocation7 + $0x78] sm:$0xff]
    %v231 = vld [vmem:[#allocation7 + $0x80] sm:$0xf]
    %v232 = vld [vmem:[#allocation7 + $0x84] sm:$0xff]
    %v233 = vld [vmem:[#allocation7 + $0x8c] sm:$0xf]
    %v234 = vld [vmem:[#allocation7 + $0x90] sm:$0xff]
    %v235 = vld [vmem:[#allocation7 + $0x98] sm:$0xf]
    %v236 = vld [vmem:[#allocation7 + $0x9c] sm:$0xff]
    %v237 = vld [vmem:[#allocation7 + $0xa4] sm:$0xf]
    %v238 = vld [vmem:[#allocation7 + $0xa8] sm:$0xff]
    %v239 = vld [vmem:[#allocation7 + $0xb0] sm:$0xf]
    %v240 = vld [vmem:[#allocation7 + $0xb4] sm:$0xff]
    %v241 = vld [vmem:[#allocation7 + $0xbc] sm:$0xf]
    %v242 = vld [vmem:[#allocation7 + $0xc0] sm:$0xff]
    %v243 = vld [vmem:[#allocation7 + $0xc8] sm:$0xf]
    %v244 = vld [vmem:[#allocation7 + $0xcc] sm:$0xff]
    %v245 = vld [vmem:[#allocation7 + $0xd4] sm:$0xf]
    %v246 = vld [vmem:[#allocation7 + $0xd8] sm:$0xff]
    %v247 = vld [vmem:[#allocation7 + $0xe0] sm:$0xf]
    %v248 = vld [vmem:[#allocation7 + $0xe4] sm:$0xff]
    %v249 = vld [vmem:[#allocation7 + $0xec] sm:$0xf]
    %v250 = vld [vmem:[#allocation7 + $0xf0] sm:$0xff]
    %v251 = vld [vmem:[#allocation7 + $0xf8] sm:$0xf]
    %v252 = vld [vmem:[#allocation7 + $0xfc] sm:$0xff]
    %v253 = vld [vmem:[#allocation7 + $0x104] sm:$0xf]
    %v254 = vld [vmem:[#allocation7 + $0x108] sm:$0xff]
    %v255 = vld [vmem:[#allocation7 + $0x110] sm:$0xf]
    %v256 = vld [vmem:[#allocation7 + $0x114] sm:$0xff]
    %v257 = vld [vmem:[#allocation7 + $0x11c] sm:$0xf]
    %v258 = vld [vmem:[#allocation7 + $0x120] sm:$0xff]
    %v259 = vld [vmem:[#allocation7 + $0x128] sm:$0xf]
    %v260 = vld [vmem:[#allocation7 + $0x12c] sm:$0xff]
    %v261 = vld [vmem:[#allocation7 + $0x134] sm:$0xf]
    %v262 = vld [vmem:[#allocation7 + $0x138] sm:$0xff]
    %v263 = vld [vmem:[#allocation7 + $0x140] sm:$0xf]
    %v264 = vld [vmem:[#allocation7 + $0x144] sm:$0xff]
    %v265 = vld [vmem:[#allocation7 + $0x14c] sm:$0xf]
    %v266 = vld [vmem:[#allocation7 + $0x150] sm:$0xff]
    %v267 = vld [vmem:[#allocation7 + $0x158] sm:$0xf]
    %v268 = vld [vmem:[#allocation7 + $0x15c] sm:$0xff]
    %v269 = vld [vmem:[#allocation7 + $0x164] sm:$0xf]
    %v270 = vld [vmem:[#allocation7 + $0x168] sm:$0xff]
    %v271 = vld [vmem:[#allocation7 + $0x170] sm:$0xf]
    %v272 = vld [vmem:[#allocation7 + $0x174] sm:$0xff]
    %v273 = vld [vmem:[#allocation7 + $0x17c] sm:$0xf]
    %v274 = vld [vmem:[#allocation7 + $0x180] sm:$0xff]
    %v275 = vld [vmem:[#allocation7 + $0x188] sm:$0xf]
    %v276 = vld [vmem:[#allocation7 + $0x18c] sm:$0xff]
    %v277 = vld [vmem:[#allocation7 + $0x194] sm:$0xf]
    %v278 = vld [vmem:[#allocation7 + $0x198] sm:$0xff]
    %v279 = vld [vmem:[#allocation7 + $0x1a0] sm:$0xf]
    %v280 = vld [vmem:[#allocation7 + $0x1a4] sm:$0xff]
    %v281 = vld [vmem:[#allocation7 + $0x1ac] sm:$0xf]
    %v282 = vld [vmem:[#allocation7 + $0x1b0] sm:$0xff]
    %v283 = vld [vmem:[#allocation7 + $0x1b8] sm:$0xf]
    %v284 = vld [vmem:[#allocation7 + $0x1bc] sm:$0xff]
    %v285 = vld [vmem:[#allocation7 + $0x1c4] sm:$0xf]
    %v286 = vld [vmem:[#allocation7 + $0x1c8] sm:$0xff]
    %v287 = vld [vmem:[#allocation7 + $0x1d0] sm:$0xf]
    %v288 = vld [vmem:[#allocation7 + $0x1d4] sm:$0xff]
    %v289 = vld [vmem:[#allocation7 + $0x1dc] sm:$0xf]
    %v290 = vld [vmem:[#allocation7 + $0x1e0] sm:$0xff]
    %v291 = vld [vmem:[#allocation7 + $0x1e8] sm:$0xf]
    %v292 = vld [vmem:[#allocation7 + $0x1ec] sm:$0xff]
    %v293 = vld [vmem:[#allocation7 + $0x1f4] sm:$0xf]
    %v294 = vld [vmem:[#allocation7 + $0x1f8] sm:$0xff]
    %v295 = vld [vmem:[#allocation7 + $0x200] sm:$0xf]
    %v296 = vld [vmem:[#allocation7 + $0x204] sm:$0xff]
    %v297 = vld [vmem:[#allocation7 + $0x20c] sm:$0xf]
    %v298 = vld [vmem:[#allocation7 + $0x210] sm:$0xff]
    %v299 = vld [vmem:[#allocation7 + $0x218] sm:$0xf]
    %v300 = vld [vmem:[#allocation7 + $0x21c] sm:$0xff]
    %v301 = vld [vmem:[#allocation7 + $0x224] sm:$0xf]
    %v302 = vld [vmem:[#allocation7 + $0x228] sm:$0xff]
    %v303 = vld [vmem:[#allocation7 + $0x230] sm:$0xf]
    %v304 = vld [vmem:[#allocation7 + $0x234] sm:$0xff]
    %v305 = vld [vmem:[#allocation7 + $0x23c] sm:$0xf]
    %v306 = vld [vmem:[%s3] sm:$0x7]
    %v308 = vlaneseq
    %v309 = vshrl.u32 %v308, 7
    %v310 = vsub.s32 0, %v309
    %v311 = vrot.slane %v306, %v310
    %v312 = vlaneseq
    %v313 = vshrl.u32 %v312, 7
    %v314 = vsub.s32 1, %v313
    %v315 = vrot.slane %v306, %v314
    %v316 = vlaneseq
    %v317 = vshrl.u32 %v316, 7
    %v318 = vsub.s32 2, %v317
    %v319 = vrot.slane %v306, %v318
    %v419 = vunpack.c.l.b16 %v210
    %v420 = vunpack.c.h.b16 %v210
    %v421 = vunpack.c.l.b16 %v211
    %v422 = vunpack.c.l.b16 %v212
    %v423 = vunpack.c.h.b16 %v212
    %v424 = vunpack.c.l.b16 %v213
    %v425 = vunpack.c.l.b16 %v214
    %v426 = vunpack.c.h.b16 %v214
    %v427 = vunpack.c.l.b16 %v215
    %v428 = vunpack.c.l.b16 %v216
    %v429 = vunpack.c.h.b16 %v216
    %v430 = vunpack.c.l.b16 %v217
    %v431 = vunpack.c.l.b16 %v218
    %v432 = vunpack.c.h.b16 %v218
    %v433 = vunpack.c.l.b16 %v219
    %v434 = vunpack.c.l.b16 %v220
    %v435 = vunpack.c.h.b16 %v220
    %v436 = vunpack.c.l.b16 %v221
    %v437 = vunpack.c.l.b16 %v222
    %v438 = vunpack.c.h.b16 %v222
    %v439 = vunpack.c.l.b16 %v223
    %v440 = vunpack.c.l.b16 %v224
    %v441 = vunpack.c.h.b16 %v224
    %v442 = vunpack.c.l.b16 %v225
    %v443 = vunpack.c.l.b16 %v226
    %v444 = vunpack.c.h.b16 %v226
    %v445 = vunpack.c.l.b16 %v227
    %v446 = vunpack.c.l.b16 %v228
    %v447 = vunpack.c.h.b16 %v228
    %v448 = vunpack.c.l.b16 %v229
    %v449 = vunpack.c.l.b16 %v230
    %v450 = vunpack.c.h.b16 %v230
    %v451 = vunpack.c.l.b16 %v231
    %v452 = vunpack.c.l.b16 %v232
    %v453 = vunpack.c.h.b16 %v232
    %v454 = vunpack.c.l.b16 %v233
    %v455 = vunpack.c.l.b16 %v234
    %v456 = vunpack.c.h.b16 %v234
    %v457 = vunpack.c.l.b16 %v235
    %v458 = vunpack.c.l.b16 %v236
    %v459 = vunpack.c.h.b16 %v236
    %v460 = vunpack.c.l.b16 %v237
    %v461 = vunpack.c.l.b16 %v238
    %v462 = vunpack.c.h.b16 %v238
    %v463 = vunpack.c.l.b16 %v239
    %v464 = vunpack.c.l.b16 %v240
    %v465 = vunpack.c.h.b16 %v240
    %v466 = vunpack.c.l.b16 %v241
    %v467 = vunpack.c.l.b16 %v242
    %v468 = vunpack.c.h.b16 %v242
    %v469 = vunpack.c.l.b16 %v243
    %v470 = vunpack.c.l.b16 %v244
    %v471 = vunpack.c.h.b16 %v244
    %v472 = vunpack.c.l.b16 %v245
    %v473 = vunpack.c.l.b16 %v246
    %v474 = vunpack.c.h.b16 %v246
    %v475 = vunpack.c.l.b16 %v247
    %v476 = vunpack.c.l.b16 %v248
    %v477 = vunpack.c.h.b16 %v248
    %v478 = vunpack.c.l.b16 %v249
    %v479 = vunpack.c.l.b16 %v250
    %v480 = vunpack.c.h.b16 %v250
    %v481 = vunpack.c.l.b16 %v251
    %v482 = vunpack.c.l.b16 %v252
    %v483 = vunpack.c.h.b16 %v252
    %v484 = vunpack.c.l.b16 %v253
    %v485 = vunpack.c.l.b16 %v254
    %v486 = vunpack.c.h.b16 %v254
    %v487 = vunpack.c.l.b16 %v255
    %v488 = vunpack.c.l.b16 %v256
    %v489 = vunpack.c.h.b16 %v256
    %v490 = vunpack.c.l.b16 %v257
    %v491 = vunpack.c.l.b16 %v258
    %v492 = vunpack.c.h.b16 %v258
    %v493 = vunpack.c.l.b16 %v259
    %v494 = vunpack.c.l.b16 %v260
    %v495 = vunpack.c.h.b16 %v260
    %v496 = vunpack.c.l.b16 %v261
    %v497 = vunpack.c.l.b16 %v262
    %v498 = vunpack.c.h.b16 %v262
    %v499 = vunpack.c.l.b16 %v263
    %v500 = vunpack.c.l.b16 %v264
    %v501 = vunpack.c.h.b16 %v264
    %v502 = vunpack.c.l.b16 %v265
    %v503 = vunpack.c.l.b16 %v266
    %v504 = vunpack.c.h.b16 %v266
    %v505 = vunpack.c.l.b16 %v267
    %v506 = vunpack.c.l.b16 %v268
    %v507 = vunpack.c.h.b16 %v268
    %v508 = vunpack.c.l.b16 %v269
    %v509 = vunpack.c.l.b16 %v270
    %v510 = vunpack.c.h.b16 %v270
    %v511 = vunpack.c.l.b16 %v271
    %v512 = vunpack.c.l.b16 %v272
    %v513 = vunpack.c.h.b16 %v272
    %v514 = vunpack.c.l.b16 %v273
    %v515 = vunpack.c.l.b16 %v274
    %v516 = vunpack.c.h.b16 %v274
    %v517 = vunpack.c.l.b16 %v275
    %v518 = vunpack.c.l.b16 %v276
    %v519 = vunpack.c.h.b16 %v276
    %v520 = vunpack.c.l.b16 %v277
    %v521 = vunpack.c.l.b16 %v278
    %v522 = vunpack.c.h.b16 %v278
    %v523 = vunpack.c.l.b16 %v279
    %v524 = vunpack.c.l.b16 %v280
    %v525 = vunpack.c.h.b16 %v280
    %v526 = vunpack.c.l.b16 %v281
    %v527 = vunpack.c.l.b16 %v282
    %v528 = vunpack.c.h.b16 %v282
    %v529 = vunpack.c.l.b16 %v283
    %v530 = vunpack.c.l.b16 %v284
    %v531 = vunpack.c.h.b16 %v284
    %v532 = vunpack.c.l.b16 %v285
    %v533 = vunpack.c.l.b16 %v286
    %v534 = vunpack.c.h.b16 %v286
    %v535 = vunpack.c.l.b16 %v287
    %v536 = vunpack.c.l.b16 %v288
    %v537 = vunpack.c.h.b16 %v288
    %v538 = vunpack.c.l.b16 %v289
    %v539 = vunpack.c.l.b16 %v290
    %v540 = vunpack.c.h.b16 %v290
    %v541 = vunpack.c.l.b16 %v291
    %v542 = vunpack.c.l.b16 %v292
    %v543 = vunpack.c.h.b16 %v292
    %v544 = vunpack.c.l.b16 %v293
    %v545 = vunpack.c.l.b16 %v294
    %v546 = vunpack.c.h.b16 %v294
    %v547 = vunpack.c.l.b16 %v295
    %v548 = vunpack.c.l.b16 %v296
    %v549 = vunpack.c.h.b16 %v296
    %v550 = vunpack.c.l.b16 %v297
    %v551 = vunpack.c.l.b16 %v298
    %v552 = vunpack.c.h.b16 %v298
    %v553 = vunpack.c.l.b16 %v299
    %v554 = vunpack.c.l.b16 %v300
    %v555 = vunpack.c.h.b16 %v300
    %v556 = vunpack.c.l.b16 %v301
    %v557 = vunpack.c.l.b16 %v302
    %v558 = vunpack.c.h.b16 %v302
    %v559 = vunpack.c.l.b16 %v303
    %v560 = vunpack.c.l.b16 %v304
    %v561 = vunpack.c.h.b16 %v304
    %v562 = vunpack.c.l.b16 %v305
    %v563 = vpack.c.b16 %v422, %v419
    %v564 = vpack.c.b16 %v423, %v420
    %v565 = vpack.c.b16 %v424, %v421
    %v566 = vpack.c.b16 %v428, %v425
    %v567 = vpack.c.b16 %v429, %v426
    %v568 = vpack.c.b16 %v430, %v427
    %v569 = vpack.c.b16 %v434, %v431
    %v570 = vpack.c.b16 %v435, %v432
    %v571 = vpack.c.b16 %v436, %v433
    %v572 = vpack.c.b16 %v440, %v437
    %v573 = vpack.c.b16 %v441, %v438
    %v574 = vpack.c.b16 %v442, %v439
    %v575 = vpack.c.b16 %v446, %v443
    %v576 = vpack.c.b16 %v447, %v444
    %v577 = vpack.c.b16 %v448, %v445
    %v578 = vpack.c.b16 %v452, %v449
    %v579 = vpack.c.b16 %v453, %v450
    %v580 = vpack.c.b16 %v454, %v451
    %v581 = vpack.c.b16 %v458, %v455
    %v582 = vpack.c.b16 %v459, %v456
    %v583 = vpack.c.b16 %v460, %v457
    %v584 = vpack.c.b16 %v464, %v461
    %v585 = vpack.c.b16 %v465, %v462
    %v586 = vpack.c.b16 %v466, %v463
    %v587 = vpack.c.b16 %v470, %v467
    %v588 = vpack.c.b16 %v471, %v468
    %v589 = vpack.c.b16 %v472, %v469
    %v590 = vpack.c.b16 %v476, %v473
    %v591 = vpack.c.b16 %v477, %v474
    %v592 = vpack.c.b16 %v478, %v475
    %v593 = vpack.c.b16 %v482, %v479
    %v594 = vpack.c.b16 %v483, %v480
    %v595 = vpack.c.b16 %v484, %v481
    %v596 = vpack.c.b16 %v488, %v485
    %v597 = vpack.c.b16 %v489, %v486
    %v598 = vpack.c.b16 %v490, %v487
    %v599 = vpack.c.b16 %v494, %v491
    %v600 = vpack.c.b16 %v495, %v492
    %v601 = vpack.c.b16 %v496, %v493
    %v602 = vpack.c.b16 %v500, %v497
    %v603 = vpack.c.b16 %v501, %v498
    %v604 = vpack.c.b16 %v502, %v499
    %v605 = vpack.c.b16 %v506, %v503
    %v606 = vpack.c.b16 %v507, %v504
    %v607 = vpack.c.b16 %v508, %v505
    %v608 = vpack.c.b16 %v512, %v509
    %v609 = vpack.c.b16 %v513, %v510
    %v610 = vpack.c.b16 %v514, %v511
    %v611 = vpack.c.b16 %v518, %v515
    %v612 = vpack.c.b16 %v519, %v516
    %v613 = vpack.c.b16 %v520, %v517
    %v614 = vpack.c.b16 %v524, %v521
    %v615 = vpack.c.b16 %v525, %v522
    %v616 = vpack.c.b16 %v526, %v523
    %v617 = vpack.c.b16 %v530, %v527
    %v618 = vpack.c.b16 %v531, %v528
    %v619 = vpack.c.b16 %v532, %v529
    %v620 = vpack.c.b16 %v536, %v533
    %v621 = vpack.c.b16 %v537, %v534
    %v622 = vpack.c.b16 %v538, %v535
    %v623 = vpack.c.b16 %v542, %v539
    %v624 = vpack.c.b16 %v543, %v540
    %v625 = vpack.c.b16 %v544, %v541
    %v626 = vpack.c.b16 %v548, %v545
    %v627 = vpack.c.b16 %v549, %v546
    %v628 = vpack.c.b16 %v550, %v547
    %v629 = vpack.c.b16 %v554, %v551
    %v630 = vpack.c.b16 %v555, %v552
    %v631 = vpack.c.b16 %v556, %v553
    %v632 = vpack.c.b16 %v560, %v557
    %v633 = vpack.c.b16 %v561, %v558
    %v634 = vpack.c.b16 %v562, %v559
    %707 = vmatprep.subr.bf16.mxu0 %v564
    %708 = vmatpush1.bf16.msra.mxu0 %v563
    %709 = vmatprep.subr.bf16.mxu0 %v567
    %710 = vmatpush1.bf16.msra.mxu0 %v566
    %711 = vmatprep.subr.bf16.mxu0 %v570
    %712 = vmatpush1.bf16.msra.mxu0 %v569
    %713 = vmatprep.subr.bf16.mxu0 %v573
    %714 = vmatpush1.bf16.msra.mxu0 %v572
    %715 = vmatprep.subr.bf16.mxu0 %v576
    %716 = vmatpush1.bf16.msra.mxu0 %v575
    %717 = vmatprep.subr.bf16.mxu0 %v579
    %718 = vmatpush1.bf16.msra.mxu0 %v578
    %719 = vmatprep.subr.bf16.mxu0 %v582
    %720 = vmatpush1.bf16.msra.mxu0 %v581
    %721 = vmatprep.subr.bf16.mxu0 %v585
    %722 = vmatpush1.bf16.msra.mxu0 %v584
    %723 = vmatprep.subr.bf16.mxu0 %v588
    %724 = vmatpush1.bf16.msra.mxu0 %v587
    %725 = vmatprep.subr.bf16.mxu0 %v591
    %726 = vmatpush1.bf16.msra.mxu0 %v590
    %727 = vmatprep.subr.bf16.mxu0 %v594
    %728 = vmatpush1.bf16.msra.mxu0 %v593
    %729 = vmatprep.subr.bf16.mxu0 %v597
    %730 = vmatpush1.bf16.msra.mxu0 %v596
    %731 = vmatprep.subr.bf16.mxu0 %v600
    %732 = vmatpush1.bf16.msra.mxu0 %v599
    %733 = vmatprep.subr.bf16.mxu0 %v603
    %734 = vmatpush1.bf16.msra.mxu0 %v602
    %735 = vmatprep.subr.bf16.mxu0 %v606
    %736 = vmatpush1.bf16.msra.mxu0 %v605
    %737 = vmatprep.subr.bf16.mxu0 %v609
    %738 = vmatpush1.bf16.msra.mxu0 %v608
    %739 = vmatprep.mubr.bf16.mxu0 %v208
    %740 = vmatmul.mubr.bf16.gmra.mrb[0].mxu0 %v207
    %v741 = vpop.f32.mrb[0].mxu0
    %v742 = vadd.f32 %v311, %v741
    %v743 = vpop.f32.mrb[0].mxu0
    %v744 = vadd.f32 %v315, %v743
    %v745 = vpop.f32.mrb[0].mxu0
    %v746 = vpop.f32.mrb[0].mxu0
    %747 = vdwg.mxu0
    %748 = vmatprep.subr.bf16.mxu0 %v612
    %749 = vmatpush1.bf16.msra.mxu0 %v611
    %750 = vmatprep.subr.bf16.mxu0 %v615
    %751 = vmatpush1.bf16.msra.mxu0 %v614
    %752 = vmatprep.subr.bf16.mxu0 %v618
    %753 = vmatpush1.bf16.msra.mxu0 %v617
    %754 = vmatprep.subr.bf16.mxu0 %v621
    %755 = vmatpush1.bf16.msra.mxu0 %v620
    %756 = vmatprep.subr.bf16.mxu0 %v624
    %757 = vmatpush1.bf16.msra.mxu0 %v623
    %758 = vmatprep.subr.bf16.mxu0 %v627
    %759 = vmatpush1.bf16.msra.mxu0 %v626
    %760 = vmatprep.subr.bf16.mxu0 %v630
    %761 = vmatpush1.bf16.msra.mxu0 %v629
    %762 = vmatprep.subr.bf16.mxu0 %v633
    %763 = vmatpush1.bf16.msra.mxu0 %v632
    %764 = vmatprep.subr.bf16.mxu0 0
    %765 = vmatpush1.bf16.msra.mxu0 0
    %766 = vmatprep.subr.bf16.mxu0 0
    %767 = vmatpush1.bf16.msra.mxu0 0
    %768 = vmatprep.subr.bf16.mxu0 0
    %769 = vmatpush1.bf16.msra.mxu0 0
    %770 = vmatprep.subr.bf16.mxu0 0
    %771 = vmatpush1.bf16.msra.mxu0 0
    %772 = vmatprep.subr.bf16.mxu0 0
    %773 = vmatpush1.bf16.msra.mxu0 0
    %774 = vmatprep.subr.bf16.mxu0 0
    %775 = vmatpush1.bf16.msra.mxu0 0
    %776 = vmatprep.subr.bf16.mxu0 0
    %777 = vmatpush1.bf16.msra.mxu0 0
    %778 = vmatprep.subr.bf16.mxu0 0
    %779 = vmatpush1.bf16.msra.mxu0 0
    %780 = vmatprep.mubr.bf16.mxu0 0
    %781 = vmatmul.mubr.bf16.gmra.mrb[0].mxu0 %v209
    %v782 = vpop.f32.mrb[0].mxu0
    %v783 = vadd.f32 %v742, %v782
    %v784 = vpop.f32.mrb[0].mxu0
    %v785 = vadd.f32 %v744, %v784
    %v786 = vpop.f32.mrb[0].mxu0
    %v787 = vpop.f32.mrb[0].mxu0
    %788 = vdwg.mxu0
    %789 = vmatprep.subr.bf16.mxu0 0
    %790 = vmatpush1.bf16.msra.mxu0 %v565
    %791 = vmatprep.subr.bf16.mxu0 0
    %792 = vmatpush1.bf16.msra.mxu0 %v568
    %793 = vmatprep.subr.bf16.mxu0 0
    %794 = vmatpush1.bf16.msra.mxu0 %v571
    %795 = vmatprep.subr.bf16.mxu0 0
    %796 = vmatpush1.bf16.msra.mxu0 %v574
    %797 = vmatprep.subr.bf16.mxu0 0
    %798 = vmatpush1.bf16.msra.mxu0 %v577
    %799 = vmatprep.subr.bf16.mxu0 0
    %800 = vmatpush1.bf16.msra.mxu0 %v580
    %801 = vmatprep.subr.bf16.mxu0 0
    %802 = vmatpush1.bf16.msra.mxu0 %v583
    %803 = vmatprep.subr.bf16.mxu0 0
    %804 = vmatpush1.bf16.msra.mxu0 %v586
    %805 = vmatprep.subr.bf16.mxu0 0
    %806 = vmatpush1.bf16.msra.mxu0 %v589
    %807 = vmatprep.subr.bf16.mxu0 0
    %808 = vmatpush1.bf16.msra.mxu0 %v592
    %809 = vmatprep.subr.bf16.mxu0 0
    %810 = vmatpush1.bf16.msra.mxu0 %v595
    %811 = vmatprep.subr.bf16.mxu0 0
    %812 = vmatpush1.bf16.msra.mxu0 %v598
    %813 = vmatprep.subr.bf16.mxu0 0
    %814 = vmatpush1.bf16.msra.mxu0 %v601
    %815 = vmatprep.subr.bf16.mxu0 0
    %816 = vmatpush1.bf16.msra.mxu0 %v604
    %817 = vmatprep.subr.bf16.mxu0 0
    %818 = vmatpush1.bf16.msra.mxu0 %v607
    %819 = vmatprep.subr.bf16.mxu0 0
    %820 = vmatpush1.bf16.msra.mxu0 %v610
    %821 = vmatprep.mubr.bf16.mxu0 %v208
    %822 = vmatmul.mubr.bf16.gmra.mrb[0].mxu0 %v207
    %v823 = vpop.f32.mrb[0].mxu0
    %v824 = vadd.f32 %v319, %v823
    %v825 = vpop.f32.mrb[0].mxu0
    %v826 = vpop.f32.mrb[0].mxu0
    %v827 = vpop.f32.mrb[0].mxu0
    %828 = vdwg.mxu0
    %829 = vmatprep.subr.bf16.mxu0 0
    %830 = vmatpush1.bf16.msra.mxu0 %v613
    %831 = vmatprep.subr.bf16.mxu0 0
    %832 = vmatpush1.bf16.msra.mxu0 %v616
    %833 = vmatprep.subr.bf16.mxu0 0
    %834 = vmatpush1.bf16.msra.mxu0 %v619
    %835 = vmatprep.subr.bf16.mxu0 0
    %836 = vmatpush1.bf16.msra.mxu0 %v622
    %837 = vmatprep.subr.bf16.mxu0 0
    %838 = vmatpush1.bf16.msra.mxu0 %v625
    %839 = vmatprep.subr.bf16.mxu0 0
    %840 = vmatpush1.bf16.msra.mxu0 %v628
    %841 = vmatprep.subr.bf16.mxu0 0
    %842 = vmatpush1.bf16.msra.mxu0 %v631
    %843 = vmatprep.subr.bf16.mxu0 0
    %844 = vmatpush1.bf16.msra.mxu0 %v634
    %845 = vmatprep.subr.bf16.mxu0 0
    %846 = vmatpush1.bf16.msra.mxu0 0
    %847 = vmatprep.subr.bf16.mxu0 0
    %848 = vmatpush1.bf16.msra.mxu0 0
    %849 = vmatprep.subr.bf16.mxu0 0
    %850 = vmatpush1.bf16.msra.mxu0 0
    %851 = vmatprep.subr.bf16.mxu0 0
    %852 = vmatpush1.bf16.msra.mxu0 0
    %853 = vmatprep.subr.bf16.mxu0 0
    %854 = vmatpush1.bf16.msra.mxu0 0
    %855 = vmatprep.subr.bf16.mxu0 0
    %856 = vmatpush1.bf16.msra.mxu0 0
    %857 = vmatprep.subr.bf16.mxu0 0
    %858 = vmatpush1.bf16.msra.mxu0 0
    %859 = vmatprep.subr.bf16.mxu0 0
    %860 = vmatpush1.bf16.msra.mxu0 0
    %861 = vmatprep.mubr.bf16.mxu0 0
    %862 = vmatmul.mubr.bf16.gmra.mrb[0].mxu0 %v209
    %v863 = vpop.f32.mrb[0].mxu0
    %v864 = vadd.f32 %v824, %v863
    %v865 = vpop.f32.mrb[0].mxu0
    %v866 = vpop.f32.mrb[0].mxu0
    %v867 = vpop.f32.mrb[0].mxu0
    %868 = vdwg.mxu0
    %v869 = vmax.f32 %v783, 0.0
    %v870 = vmax.f32 %v785, 0.0
    %v871 = vmax.f32 %v864, 0.0
    %v872 = vpack.c.bf16 %v869, %v869
    %v873 = vpack.c.bf16 %v870, %v870
    %v874 = vpack.c.bf16 %v871, %v871
    %v875 = vld [vmem:[#allocation8] sm:$0xff]
    %v876 = vld [vmem:[#allocation8 + $0x8] sm:$0xff]
    %v877 = vld [vmem:[#allocation8 + $0x10] sm:$0xff]
    %v878 = vld [vmem:[#allocation8 + $0x18] sm:$0xff]
    %v879 = vld [vmem:[#allocation8 + $0x20] sm:$0xff]
    %v880 = vld [vmem:[#allocation8 + $0x28] sm:$0xff]
    %v881 = vld [vmem:[#allocation8 + $0x30] sm:$0xff]
    %v882 = vld [vmem:[#allocation8 + $0x38] sm:$0xff]
    %v883 = vld [vmem:[#allocation8 + $0x40] sm:$0xff]
    %v884 = vld [vmem:[#allocation8 + $0x48] sm:$0xff]
    %v885 = vld [vmem:[#allocation8 + $0x50] sm:$0xff]
    %v886 = vld [vmem:[#allocation8 + $0x58] sm:$0xff]
    %v887 = vld [vmem:[#allocation8 + $0x60] sm:$0xff]
    %v888 = vld [vmem:[#allocation8 + $0x68] sm:$0xff]
    %v889 = vld [vmem:[#allocation8 + $0x70] sm:$0xff]
    %v890 = vld [vmem:[#allocation8 + $0x78] sm:$0xff]
    %v891 = vld [vmem:[#allocation8 + $0x80] sm:$0xff]
    %v892 = vld [vmem:[#allocation8 + $0x88] sm:$0xff]
    %v893 = vld [vmem:[#allocation8 + $0x90] sm:$0xff]
    %v894 = vld [vmem:[#allocation8 + $0x98] sm:$0xff]
    %v895 = vld [vmem:[#allocation8 + $0xa0] sm:$0xff]
    %v896 = vld [vmem:[#allocation8 + $0xa8] sm:$0xff]
    %v897 = vld [vmem:[#allocation8 + $0xb0] sm:$0xff]
    %v898 = vld [vmem:[#allocation8 + $0xb8] sm:$0xff]
    %v899 = vld [vmem:[#allocation8 + $0xc0] sm:$0xff]
    %v900 = vld [vmem:[#allocation8 + $0xc8] sm:$0xff]
    %v901 = vld [vmem:[#allocation8 + $0xd0] sm:$0xff]
    %v902 = vld [vmem:[#allocation8 + $0xd8] sm:$0xff]
    %v903 = vld [vmem:[#allocation8 + $0xe0] sm:$0xff]
    %v904 = vld [vmem:[#allocation8 + $0xe8] sm:$0xff]
    %v905 = vld [vmem:[#allocation8 + $0xf0] sm:$0xff]
    %v906 = vld [vmem:[#allocation8 + $0xf8] sm:$0xff]
    %v907 = vld [vmem:[#allocation8 + $0x100] sm:$0xff]
    %v908 = vld [vmem:[#allocation8 + $0x108] sm:$0xff]
    %v909 = vld [vmem:[#allocation8 + $0x110] sm:$0xff]
    %v910 = vld [vmem:[#allocation8 + $0x118] sm:$0xff]
    %v911 = vld [vmem:[#allocation8 + $0x120] sm:$0xff]
    %v912 = vld [vmem:[#allocation8 + $0x128] sm:$0xff]
    %v913 = vld [vmem:[#allocation8 + $0x130] sm:$0xff]
    %v914 = vld [vmem:[#allocation8 + $0x138] sm:$0xff]
    %v915 = vld [vmem:[#allocation8 + $0x140] sm:$0xff]
    %v916 = vld [vmem:[#allocation8 + $0x148] sm:$0xff]
    %v917 = vld [vmem:[#allocation8 + $0x150] sm:$0xff]
    %v918 = vld [vmem:[#allocation8 + $0x158] sm:$0xff]
    %v919 = vld [vmem:[#allocation8 + $0x160] sm:$0xff]
    %v920 = vld [vmem:[#allocation8 + $0x168] sm:$0xff]
    %v921 = vld [vmem:[#allocation8 + $0x170] sm:$0xff]
    %v922 = vld [vmem:[#allocation8 + $0x178] sm:$0xff]
    %v923 = vld [vmem:[%s5] sm:$0x3]
    %v925 = vlaneseq
    %v926 = vshrl.u32 %v925, 7
    %v927 = vsub.s32 0, %v926
    %v928 = vrot.slane %v923, %v927
    %v929 = vlaneseq
    %v930 = vshrl.u32 %v929, 7
    %v931 = vsub.s32 1, %v930
    %v932 = vrot.slane %v923, %v931
    %v983 = vunpack.c.l.b16 %v875
    %v984 = vunpack.c.h.b16 %v875
    %v985 = vunpack.c.l.b16 %v876
    %v986 = vunpack.c.h.b16 %v876
    %v987 = vunpack.c.l.b16 %v877
    %v988 = vunpack.c.h.b16 %v877
    %v989 = vunpack.c.l.b16 %v878
    %v990 = vunpack.c.h.b16 %v878
    %v991 = vunpack.c.l.b16 %v879
    %v992 = vunpack.c.h.b16 %v879
    %v993 = vunpack.c.l.b16 %v880
    %v994 = vunpack.c.h.b16 %v880
    %v995 = vunpack.c.l.b16 %v881
    %v996 = vunpack.c.h.b16 %v881
    %v997 = vunpack.c.l.b16 %v882
    %v998 = vunpack.c.h.b16 %v882
    %v999 = vunpack.c.l.b16 %v883
    %v1000 = vunpack.c.h.b16 %v883
    %v1001 = vunpack.c.l.b16 %v884
    %v1002 = vunpack.c.h.b16 %v884
    %v1003 = vunpack.c.l.b16 %v885
    %v1004 = vunpack.c.h.b16 %v885
    %v1005 = vunpack.c.l.b16 %v886
    %v1006 = vunpack.c.h.b16 %v886
    %v1007 = vunpack.c.l.b16 %v887
    %v1008 = vunpack.c.h.b16 %v887
    %v1009 = vunpack.c.l.b16 %v888
    %v1010 = vunpack.c.h.b16 %v888
    %v1011 = vunpack.c.l.b16 %v889
    %v1012 = vunpack.c.h.b16 %v889
    %v1013 = vunpack.c.l.b16 %v890
    %v1014 = vunpack.c.h.b16 %v890
    %v1015 = vunpack.c.l.b16 %v891
    %v1016 = vunpack.c.h.b16 %v891
    %v1017 = vunpack.c.l.b16 %v892
    %v1018 = vunpack.c.h.b16 %v892
    %v1019 = vunpack.c.l.b16 %v893
    %v1020 = vunpack.c.h.b16 %v893
    %v1021 = vunpack.c.l.b16 %v894
    %v1022 = vunpack.c.h.b16 %v894
    %v1023 = vunpack.c.l.b16 %v895
    %v1024 = vunpack.c.h.b16 %v895
    %v1025 = vunpack.c.l.b16 %v896
    %v1026 = vunpack.c.h.b16 %v896
    %v1027 = vunpack.c.l.b16 %v897
    %v1028 = vunpack.c.h.b16 %v897
    %v1029 = vunpack.c.l.b16 %v898
    %v1030 = vunpack.c.h.b16 %v898
    %v1031 = vunpack.c.l.b16 %v899
    %v1032 = vunpack.c.h.b16 %v899
    %v1033 = vunpack.c.l.b16 %v900
    %v1034 = vunpack.c.h.b16 %v900
    %v1035 = vunpack.c.l.b16 %v901
    %v1036 = vunpack.c.h.b16 %v901
    %v1037 = vunpack.c.l.b16 %v902
    %v1038 = vunpack.c.h.b16 %v902
    %v1039 = vunpack.c.l.b16 %v903
    %v1040 = vunpack.c.h.b16 %v903
    %v1041 = vunpack.c.l.b16 %v904
    %v1042 = vunpack.c.h.b16 %v904
    %v1043 = vunpack.c.l.b16 %v905
    %v1044 = vunpack.c.h.b16 %v905
    %v1045 = vunpack.c.l.b16 %v906
    %v1046 = vunpack.c.h.b16 %v906
    %v1047 = vunpack.c.l.b16 %v907
    %v1048 = vunpack.c.h.b16 %v907
    %v1049 = vunpack.c.l.b16 %v908
    %v1050 = vunpack.c.h.b16 %v908
    %v1051 = vunpack.c.l.b16 %v909
    %v1052 = vunpack.c.h.b16 %v909
    %v1053 = vunpack.c.l.b16 %v910
    %v1054 = vunpack.c.h.b16 %v910
    %v1055 = vunpack.c.l.b16 %v911
    %v1056 = vunpack.c.h.b16 %v911
    %v1057 = vunpack.c.l.b16 %v912
    %v1058 = vunpack.c.h.b16 %v912
    %v1059 = vunpack.c.l.b16 %v913
    %v1060 = vunpack.c.h.b16 %v913
    %v1061 = vunpack.c.l.b16 %v914
    %v1062 = vunpack.c.h.b16 %v914
    %v1063 = vunpack.c.l.b16 %v915
    %v1064 = vunpack.c.h.b16 %v915
    %v1065 = vunpack.c.l.b16 %v916
    %v1066 = vunpack.c.h.b16 %v916
    %v1067 = vunpack.c.l.b16 %v917
    %v1068 = vunpack.c.h.b16 %v917
    %v1069 = vunpack.c.l.b16 %v918
    %v1070 = vunpack.c.h.b16 %v918
    %v1071 = vunpack.c.l.b16 %v919
    %v1072 = vunpack.c.h.b16 %v919
    %v1073 = vunpack.c.l.b16 %v920
    %v1074 = vunpack.c.h.b16 %v920
    %v1075 = vunpack.c.l.b16 %v921
    %v1076 = vunpack.c.h.b16 %v921
    %v1077 = vunpack.c.l.b16 %v922
    %v1078 = vunpack.c.h.b16 %v922
    %v1079 = vpack.c.b16 %v985, %v983
    %v1080 = vpack.c.b16 %v986, %v984
    %v1081 = vpack.c.b16 %v989, %v987
    %v1082 = vpack.c.b16 %v990, %v988
    %v1083 = vpack.c.b16 %v993, %v991
    %v1084 = vpack.c.b16 %v994, %v992
    %v1085 = vpack.c.b16 %v997, %v995
    %v1086 = vpack.c.b16 %v998, %v996
    %v1087 = vpack.c.b16 %v1001, %v999
    %v1088 = vpack.c.b16 %v1002, %v1000
    %v1089 = vpack.c.b16 %v1005, %v1003
    %v1090 = vpack.c.b16 %v1006, %v1004
    %v1091 = vpack.c.b16 %v1009, %v1007
    %v1092 = vpack.c.b16 %v1010, %v1008
    %v1093 = vpack.c.b16 %v1013, %v1011
    %v1094 = vpack.c.b16 %v1014, %v1012
    %v1095 = vpack.c.b16 %v1017, %v1015
    %v1096 = vpack.c.b16 %v1018, %v1016
    %v1097 = vpack.c.b16 %v1021, %v1019
    %v1098 = vpack.c.b16 %v1022, %v1020
    %v1099 = vpack.c.b16 %v1025, %v1023
    %v1100 = vpack.c.b16 %v1026, %v1024
    %v1101 = vpack.c.b16 %v1029, %v1027
    %v1102 = vpack.c.b16 %v1030, %v1028
    %v1103 = vpack.c.b16 %v1033, %v1031
    %v1104 = vpack.c.b16 %v1034, %v1032
    %v1105 = vpack.c.b16 %v1037, %v1035
    %v1106 = vpack.c.b16 %v1038, %v1036
    %v1107 = vpack.c.b16 %v1041, %v1039
    %v1108 = vpack.c.b16 %v1042, %v1040
    %v1109 = vpack.c.b16 %v1045, %v1043
    %v1110 = vpack.c.b16 %v1046, %v1044
    %v1111 = vpack.c.b16 %v1049, %v1047
    %v1112 = vpack.c.b16 %v1050, %v1048
    %v1113 = vpack.c.b16 %v1053, %v1051
    %v1114 = vpack.c.b16 %v1054, %v1052
    %v1115 = vpack.c.b16 %v1057, %v1055
    %v1116 = vpack.c.b16 %v1058, %v1056
    %v1117 = vpack.c.b16 %v1061, %v1059
    %v1118 = vpack.c.b16 %v1062, %v1060
    %v1119 = vpack.c.b16 %v1065, %v1063
    %v1120 = vpack.c.b16 %v1066, %v1064
    %v1121 = vpack.c.b16 %v1069, %v1067
    %v1122 = vpack.c.b16 %v1070, %v1068
    %v1123 = vpack.c.b16 %v1073, %v1071
    %v1124 = vpack.c.b16 %v1074, %v1072
    %v1125 = vpack.c.b16 %v1077, %v1075
    %v1126 = vpack.c.b16 %v1078, %v1076
    %1175 = vmatprep.subr.bf16.mxu0 %v1080
    %1176 = vmatpush1.bf16.msra.mxu0 %v1079
    %1177 = vmatprep.subr.bf16.mxu0 %v1082
    %1178 = vmatpush1.bf16.msra.mxu0 %v1081
    %1179 = vmatprep.subr.bf16.mxu0 %v1084
    %1180 = vmatpush1.bf16.msra.mxu0 %v1083
    %1181 = vmatprep.subr.bf16.mxu0 %v1086
    %1182 = vmatpush1.bf16.msra.mxu0 %v1085
    %1183 = vmatprep.subr.bf16.mxu0 %v1088
    %1184 = vmatpush1.bf16.msra.mxu0 %v1087
    %1185 = vmatprep.subr.bf16.mxu0 %v1090
    %1186 = vmatpush1.bf16.msra.mxu0 %v1089
    %1187 = vmatprep.subr.bf16.mxu0 %v1092
    %1188 = vmatpush1.bf16.msra.mxu0 %v1091
    %1189 = vmatprep.subr.bf16.mxu0 %v1094
    %1190 = vmatpush1.bf16.msra.mxu0 %v1093
    %1191 = vmatprep.subr.bf16.mxu0 %v1096
    %1192 = vmatpush1.bf16.msra.mxu0 %v1095
    %1193 = vmatprep.subr.bf16.mxu0 %v1098
    %1194 = vmatpush1.bf16.msra.mxu0 %v1097
    %1195 = vmatprep.subr.bf16.mxu0 %v1100
    %1196 = vmatpush1.bf16.msra.mxu0 %v1099
    %1197 = vmatprep.subr.bf16.mxu0 %v1102
    %1198 = vmatpush1.bf16.msra.mxu0 %v1101
    %1199 = vmatprep.subr.bf16.mxu0 %v1104
    %1200 = vmatpush1.bf16.msra.mxu0 %v1103
    %1201 = vmatprep.subr.bf16.mxu0 %v1106
    %1202 = vmatpush1.bf16.msra.mxu0 %v1105
    %1203 = vmatprep.subr.bf16.mxu0 %v1108
    %1204 = vmatpush1.bf16.msra.mxu0 %v1107
    %1205 = vmatprep.subr.bf16.mxu0 %v1110
    %1206 = vmatpush1.bf16.msra.mxu0 %v1109
    %1207 = vmatprep.mubr.bf16.mxu0 %v873
    %1208 = vmatmul.mubr.bf16.gmra.mrb[0].mxu0 %v872
    %v1209 = vpop.f32.mrb[0].mxu0
    %v1210 = vadd.f32 %v928, %v1209
    %v1211 = vpop.f32.mrb[0].mxu0
    %v1212 = vadd.f32 %v932, %v1211
    %v1213 = vpop.f32.mrb[0].mxu0
    %v1214 = vpop.f32.mrb[0].mxu0
    %1215 = vdwg.mxu0
    %1216 = vmatprep.subr.bf16.mxu0 %v1112
    %1217 = vmatpush1.bf16.msra.mxu0 %v1111
    %1218 = vmatprep.subr.bf16.mxu0 %v1114
    %1219 = vmatpush1.bf16.msra.mxu0 %v1113
    %1220 = vmatprep.subr.bf16.mxu0 %v1116
    %1221 = vmatpush1.bf16.msra.mxu0 %v1115
    %1222 = vmatprep.subr.bf16.mxu0 %v1118
    %1223 = vmatpush1.bf16.msra.mxu0 %v1117
    %1224 = vmatprep.subr.bf16.mxu0 %v1120
    %1225 = vmatpush1.bf16.msra.mxu0 %v1119
    %1226 = vmatprep.subr.bf16.mxu0 %v1122
    %1227 = vmatpush1.bf16.msra.mxu0 %v1121
    %1228 = vmatprep.subr.bf16.mxu0 %v1124
    %1229 = vmatpush1.bf16.msra.mxu0 %v1123
    %1230 = vmatprep.subr.bf16.mxu0 %v1126
    %1231 = vmatpush1.bf16.msra.mxu0 %v1125
    %1232 = vmatprep.subr.bf16.mxu0 0
    %1233 = vmatpush1.bf16.msra.mxu0 0
    %1234 = vmatprep.subr.bf16.mxu0 0
    %1235 = vmatpush1.bf16.msra.mxu0 0
    %1236 = vmatprep.subr.bf16.mxu0 0
    %1237 = vmatpush1.bf16.msra.mxu0 0
    %1238 = vmatprep.subr.bf16.mxu0 0
    %1239 = vmatpush1.bf16.msra.mxu0 0
    %1240 = vmatprep.subr.bf16.mxu0 0
    %1241 = vmatpush1.bf16.msra.mxu0 0
    %1242 = vmatprep.subr.bf16.mxu0 0
    %1243 = vmatpush1.bf16.msra.mxu0 0
    %1244 = vmatprep.subr.bf16.mxu0 0
    %1245 = vmatpush1.bf16.msra.mxu0 0
    %1246 = vmatprep.subr.bf16.mxu0 0
    %1247 = vmatpush1.bf16.msra.mxu0 0
    %1248 = vmatprep.mubr.bf16.mxu0 0
    %1249 = vmatmul.mubr.bf16.gmra.mrb[0].mxu0 %v874
    %v1250 = vpop.f32.mrb[0].mxu0
    %v1251 = vadd.f32 %v1210, %v1250
    %v1252 = vpop.f32.mrb[0].mxu0
    %v1253 = vadd.f32 %v1212, %v1252
    %v1254 = vpop.f32.mrb[0].mxu0
    %v1255 = vpop.f32.mrb[0].mxu0
    %1256 = vdwg.mxu0
    %1257 = vst [vmem:[#allocation10] sm:$0xff] %v1251
    %1258 = vst [vmem:[#allocation10 + $0x8] sm:$0xff] %v1253
    // Predicated region
    $region42: #{tpu_custom_call.1} parent=1 // pred_check
      _
    $region43: #{tpu_custom_call.1} parent=1 // pred_check_branch
      %1260 = sbr.rel (0) target = $region45
    $region44: #{tpu_custom_call.1} parent=1 // pred_region
      %s1262 = ssub.s32 256, 256
      %1263 = vsyncadd [#allocation4], %s1262
      %s1265 = sshll.u32 [#allocation10], 4
      %s1266 = int_to_ptr.vmem [resolvable:$true] %s1265
      %1268 = dma.vmem_to_hbm [thread:$0]  %s1266, 256, %s6, [#allocation4]
    $region45: #{tpu_custom_call.1} parent=1 // pred_fallthru
      _
    // Predicated region
    $region46: #{tpu_custom_call.1} parent=1 // pred_check
      _
    $region47: #{tpu_custom_call.1} parent=1 // pred_check_branch
      %1270 = sbr.rel (0) target = $region49
    $region48: #{tpu_custom_call.1} parent=1 // pred_region
      %1271 = dma.done [#allocation4], 256
    $region49: #{tpu_custom_call.1} parent=1 // pred_fallthru
      _
    %1272 = vsyncpa [#allocation3], 1
    %1273 = vsyncpa [#allocation6], 1
    %1274 = vsyncpa [#allocation9], 1
    %1275 = vsyncpa [#allocation4], 1

</llo_original>
